<compile_context>
chip_gen: v7x
topology: tpu7x:2x2x1
jax: 0.10.0
libtpu: 0.0.40
codegen_flags: <defaults>
</compile_context>

<pallas_src>
import functools

import jax
import jax.numpy as jnp
from jax import lax
from jax.experimental import pallas as pl
from jax.experimental.pallas import tpu as pltpu

_EPS = 1e-9
_LANES = 128
_MAX_BLOCK_ROWS = 2048   # 2048x128 f32 plane = 1 MiB; 6 planes x 2 buffers = 12 MiB VMEM


def _cdiv(a, b):
    return -(-a // b)


def _round_up(a, b):
    return _cdiv(a, b) * b


def _safe_ratio(num, den):
    """num / den with the reference's |den| >= eps clamp.

    den == 0 is treated as +eps (sign(0) == 0 in the reference would otherwise
    give Inf/NaN).  The divide is an EUP approximate reciprocal plus one Newton
    step, so the VALU slot only sees a few multiplies per element.
    """
    mag = jnp.maximum(jnp.abs(den), _EPS)
    signed = jnp.where(den >= 0.0, mag, -mag)
    r = pl.reciprocal(signed, approx=True)
    r = r * (2.0 - signed * r)          # one Newton step -> ~full f32 accuracy
    return num * r


def _fold_rows(x):
    """Reduce a (block_rows, 128) plane to an (8, 128) partial sum (VALU-only)."""
    rows = x.shape[0]
    return jnp.sum(x.reshape(rows // 8, 8, _LANES), axis=0)


def _uhg_anomaly_loss_kernel(xs_ref, ys_ref, xd_ref, yd_ref, xn_ref, yn_ref,
                             out_ref, prox_acc, comp_acc, spread_acc, *,
                             n_edges, n_nodes, k_spread, edge_tiles, node_tiles,
                             tiles_per_core, spread_weight, quad_weight):
    c = pl.program_id(0)            # "parallel" axis (one slice per TensorCore)
    i = pl.program_id(1)            # "arbitrary" reduction axis within the slice
    t = c * tiles_per_core + i      # global row-tile index

    @pl.when(i == 0)
    def _init():
        prox_acc[...] = jnp.zeros_like(prox_acc)
        comp_acc[...] = jnp.zeros_like(comp_acc)
        spread_acc[...] = jnp.zeros_like(spread_acc)

    # ---- proximity: quadrance(z[src], z[dst]) over this edge tile -----------
    @pl.when(t < edge_tiles)
    def _proximity():
        xs, ys = xs_ref[...], ys_ref[...]
        xd, yd = xd_ref[...], yd_ref[...]
        # Homogeneous coordinate is identically 1 -> inner products specialize.
        aa = 1.0 - (xs * xs + ys * ys)
        bb = 1.0 - (xd * xd + yd * yd)
        ab = 1.0 - (xs * xd + ys * yd)
        # Padded edges (all zeros) give aa=bb=ab=1 -> contribution exactly 0.
        prox_acc[...] += _fold_rows(_safe_ratio(ab * ab - aa * bb, aa * bb))

    # ---- compactness: quadrance(z, origin=(0,0,1)) over this node tile ------
    @pl.when(t < node_tiles)
    def _compactness():
        xn, yn = xn_ref[...], yn_ref[...]
        aa = 1.0 - (xn * xn + yn * yn)
        comp_acc[...] += _fold_rows(_safe_ratio(1.0 - aa, aa))  # bb = ab = 1

    # ---- spread over the first k_spread (<=10) edges: first 8x128 block -----
    if k_spread > 0:
        @pl.when(t == 0)
        def _spread():
            xs, ys = xs_ref[:8, :], ys_ref[:8, :]
            xd, yd = xd_ref[:8, :], yd_ref[:8, :]
            # Line through p=(x,y,1) and the origin: cross(p,(0,0,1)) = (y,-x,0).
            ll = -(xs * xs + ys * ys)
            mm = -(xd * xd + yd * yd)
            lm = -(xs * xd + ys * yd)
            sp = _safe_ratio(lm * lm - ll * mm, ll * mm)
            row = lax.broadcasted_iota(jnp.int32, sp.shape, 0)
            lane = lax.broadcasted_iota(jnp.int32, sp.shape, 1)
            keep = (row * _LANES + lane) < k_spread
            spread_acc[...] = jnp.where(keep, sp, 0.0)

    @pl.when(i == pl.num_programs(1) - 1)
    def _finalize():
        prox = jnp.sum(prox_acc[...]) / jnp.float32(n_edges)
        comp = jnp.sum(comp_acc[...]) / jnp.float32(n_nodes)
        spread = jnp.sum(spread_acc[...]) / jnp.float32(max(k_spread, 1))
        total = quad_weight * (prox + comp) + spread_weight * spread
        # Per-core partial loss: fill the whole (8,128) output block (lane-dense
        # unmasked store); the wrapper reads element [0,0] of each block.
        out_ref[...] = jnp.full(out_ref.shape, total, dtype=out_ref.dtype)


def uhg_anomaly_loss(z, edge_index, spread_weight=0.1, quad_weight=1.0, margin=1.0):
    """JAX/Pallas equivalent of UHGAnomalyLoss.forward(z, edge_index) -> scalar loss."""
    del margin  # present in the module __init__ but unused by forward
    z = jnp.asarray(z, jnp.float32)
    n_nodes, dim = z.shape

    # to_uhg_space (glue): keep the first two spatial coords; the homogeneous
    # coordinate (==1) is folded directly into the kernel algebra.
    if dim >= 2:
        z2 = z[:, :2]
    else:
        z2 = jnp.concatenate([z, jnp.zeros((n_nodes, 1), jnp.float32)], axis=-1)

    edge_index = jnp.asarray(edge_index, jnp.int32)
    src, dst = edge_index[0], edge_index[1]
    n_edges = int(src.shape[0])
    k_spread = min(10, n_edges)
    # TODO(synk): PyTorch raises on out-of-range edge indices; jnp.take clamps.
    # TODO(synk): n_edges == 0 yields NaN for the proximity mean (same as torch
    # mean over an empty tensor); spread term correctly falls back to 0.

    # One row-gather per endpoint (2 gathers instead of 4 scalar takes); the
    # column split / pad / reshape below fuses as a consumer of the gathers.
    g_src = jnp.take(z2, src, axis=0)        # (E, 2)
    g_dst = jnp.take(z2, dst, axis=0)        # (E, 2)
    xs, ys = g_src[:, 0], g_src[:, 1]
    xd, yd = g_dst[:, 0], g_dst[:, 1]
    xn, yn = z2[:, 0], z2[:, 1]

    # Lane-dense planes: [rows, 128] with the edge/node index across lanes.
    rows_e = _cdiv(max(n_edges, 1), _LANES)
    rows_n = _cdiv(max(n_nodes, 1), _LANES)
    max_rows = max(rows_e, rows_n)
    # Prefer >= 2 row-tiles so the leading "parallel" grid axis keeps both v7x
    # TensorCores busy; 1-TC chips just run one extra cheap grid step.
    if max_rows >= 64:
        target_rows = _round_up(_cdiv(max_rows, 2), 8)
    else:
        target_rows = _round_up(max_rows, 8)
    block_rows = min(_MAX_BLOCK_ROWS, target_rows)
    edge_tiles = _cdiv(rows_e, block_rows)
    node_tiles = _cdiv(rows_n, block_rows)
    num_tiles = max(edge_tiles, node_tiles)
    n_split = 2 if num_tiles >= 2 else 1
    tiles_per_core = _cdiv(num_tiles, n_split)

    def to_plane(v, tiles):
        rows = tiles * block_rows
        v = jnp.pad(v.astype(jnp.float32), (0, rows * _LANES - v.shape[0]))
        return v.reshape(rows, _LANES)

    xs_p, ys_p, xd_p, yd_p = (to_plane(v, edge_tiles) for v in (xs, ys, xd, yd))
    xn_p, yn_p = to_plane(xn, node_tiles), to_plane(yn, node_tiles)

    def tile_map(tiles):
        # Clamp to the last valid tile; pl.when in the kernel skips the compute.
        return lambda c, i: (jnp.minimum(c * tiles_per_core + i, tiles - 1), 0)

    edge_spec = pl.BlockSpec((block_rows, _LANES), tile_map(edge_tiles))
    node_spec = pl.BlockSpec((block_rows, _LANES), tile_map(node_tiles))

    kernel = functools.partial(
        _uhg_anomaly_loss_kernel,
        n_edges=n_edges, n_nodes=n_nodes, k_spread=k_spread,
        edge_tiles=edge_tiles, node_tiles=node_tiles,
        tiles_per_core=tiles_per_core,
        spread_weight=float(spread_weight), quad_weight=float(quad_weight),
    )

    # VMEM: 6 planes x 2 pipeline buffers + small accumulators/output + margin.
    vmem_est = 6 * 2 * block_rows * _LANES * 4 + (4 << 20)
    vmem_limit = min(max(vmem_est, 32 << 20), 60 << 20)

    out = pl.pallas_call(
        kernel,
        out_shape=jax.ShapeDtypeStruct((n_split * 8, _LANES), jnp.float32),
        grid=(n_split, tiles_per_core),
        in_specs=[edge_spec, edge_spec, edge_spec, edge_spec, node_spec, node_spec],
        out_specs=pl.BlockSpec((8, _LANES), lambda c, i: (c, 0)),
        scratch_shapes=[
            pltpu.VMEM((8, _LANES), jnp.float32),   # proximity partial sums
            pltpu.VMEM((8, _LANES), jnp.float32),   # compactness partial sums
            pltpu.VMEM((8, _LANES), jnp.float32),   # spread (first <=10 edges)
        ],
        compiler_params=pltpu.CompilerParams(
            dimension_semantics=("parallel", "arbitrary"),
            vmem_limit_bytes=vmem_limit,
        ),
    )(xs_p, ys_p, xd_p, yd_p, xn_p, yn_p)

    # Each core's (8,128) block is filled with its partial loss; sum the blocks.
    return jnp.sum(out.reshape(n_split, 8, _LANES)[:, 0, 0])


def _reference_loss(z, edge_index, spread_weight, quad_weight):
    """Pure-JAX transcription of the PyTorch reference (validation only)."""
    z = jnp.asarray(z, jnp.float32)
    n, d = z.shape
    if d == 1:
        zu = jnp.concatenate([z, jnp.zeros((n, 1)), jnp.ones((n, 1))], axis=-1)
    elif d == 2:
        zu = jnp.concatenate([z, jnp.ones((n, 1))], axis=-1)
    else:
        zu = jnp.concatenate([z[:, :2], jnp.ones((n, 1))], axis=-1)

    def inner(a, b):
        return (-jnp.sum(a[..., :-1] * b[..., :-1], axis=-1, keepdims=True)
                + a[..., -1:] * b[..., -1:])

    def quad(a, b):
        aa, bb, ab = inner(a, a), inner(b, b), inner(a, b)
        num = ab * ab - aa * bb
        den = aa * bb
        safe = jnp.maximum(jnp.abs(den), 1e-9) * jnp.sign(den)
        return (num / safe)[..., 0]

    src, dst = edge_index[0], edge_index[1]
    prox = jnp.mean(quad(zu[src], zu[dst]))
    origin = jnp.zeros((1, 3), jnp.float32).at[0, 2].set(1.0)
    comp = jnp.mean(quad(zu, origin))
    lines = jnp.cross(zu, jnp.broadcast_to(origin, zu.shape))
    k = min(10, int(src.shape[0]))
    spread = jnp.mean(quad(lines[src[:k]], lines[dst[:k]])) if k > 0 else jnp.float32(0.0)
    return quad_weight * (prox + comp) + spread_weight * spread


if __name__ == "__main__":
    key = jax.random.PRNGKey(0)
    k_z, k_e = jax.random.split(key)

    num_nodes, feat_dim, num_edges = 16, 8, 24
    z = jax.random.normal(k_z, (num_nodes, feat_dim), dtype=jnp.float32)
    edge_index = jax.random.randint(k_e, (2, num_edges), 0, num_nodes, dtype=jnp.int32)

    loss = uhg_anomaly_loss(z, edge_index, spread_weight=0.1, quad_weight=1.0, margin=1.0)
    loss = jax.block_until_ready(loss)

    ref = jax.block_until_ready(_reference_loss(z, edge_index, 0.1, 1.0))
    assert loss.shape == () and bool(jnp.isfinite(loss))
    assert jnp.allclose(loss, ref, rtol=1e-3, atol=1e-4), (loss, ref)
    print("KERNEL_OK")
</pallas_src>

<mosaic_0001>
module attributes {stable_mosaic.version = 11 : i64} {
  func.func @_uhg_anomaly_loss_kernel(%arg0: i32, %arg1: i32, %arg2: memref<8x128xf32, #tpu.memory_space<vmem>>, %arg3: memref<8x128xf32, #tpu.memory_space<vmem>>, %arg4: memref<8x128xf32, #tpu.memory_space<vmem>>, %arg5: memref<8x128xf32, #tpu.memory_space<vmem>>, %arg6: memref<8x128xf32, #tpu.memory_space<vmem>>, %arg7: memref<8x128xf32, #tpu.memory_space<vmem>>, %arg8: memref<8x128xf32, #tpu.memory_space<vmem>>, %arg9: memref<8x128xf32, #tpu.memory_space<vmem>>, %arg10: memref<8x128xf32, #tpu.memory_space<vmem>>, %arg11: memref<8x128xf32, #tpu.memory_space<vmem>>) attributes {dimension_semantics = [#tpu.dimension_semantics<parallel>, #tpu.dimension_semantics<arbitrary>], iteration_bounds = array<i64: 1, 1>, scalar_prefetch = 0 : i64, scratch_operands = 3 : i64, tpu.core_type = #tpu.core_type<tc>, window_params = [{transform_indices = @transform_0, window_bounds = array<i64: 8, 128>}, {transform_indices = @transform_1, window_bounds = array<i64: 8, 128>}, {transform_indices = @transform_2, window_bounds = array<i64: 8, 128>}, {transform_indices = @transform_3, window_bounds = array<i64: 8, 128>}, {transform_indices = @transform_4, window_bounds = array<i64: 8, 128>}, {transform_indices = @transform_5, window_bounds = array<i64: 8, 128>}, {transform_indices = @transform_6, window_bounds = array<i64: 8, 128>}]} {
    %c1_i32 = arith.constant 1 : i32
    %0 = arith.muli %arg0, %c1_i32 : i32
    %1 = arith.addi %0, %arg1 : i32
    %c0_i32 = arith.constant 0 : i32
    %2 = arith.cmpi eq, %arg1, %c0_i32 : i32
    %3 = arith.extui %2 : i1 to i32
    %c0_i32_0 = arith.constant 0 : i32
    %4 = arith.cmpi ne, %3, %c0_i32_0 : i32
    scf.if %4 {
      %cst = arith.constant 0.000000e+00 : f32
      %17 = vector.broadcast %cst : f32 to vector<8x128xf32>
      %c0 = arith.constant 0 : index
      %c0_9 = arith.constant 0 : index
      %18 = vector.load %arg9[%c0, %c0_9] : memref<8x128xf32, #tpu.memory_space<vmem>>, vector<8x128xf32>
      tpu.vector_store %arg9[%c0, %c0_9], %17 {strides = array<i32>} : memref<8x128xf32, #tpu.memory_space<vmem>>, vector<8x128xf32>,
      %cst_10 = arith.constant 0.000000e+00 : f32
      %19 = vector.broadcast %cst_10 : f32 to vector<8x128xf32>
      %c0_11 = arith.constant 0 : index
      %c0_12 = arith.constant 0 : index
      %20 = vector.load %arg10[%c0_11, %c0_12] : memref<8x128xf32, #tpu.memory_space<vmem>>, vector<8x128xf32>
      tpu.vector_store %arg10[%c0_11, %c0_12], %19 {strides = array<i32>} : memref<8x128xf32, #tpu.memory_space<vmem>>, vector<8x128xf32>,
      %cst_13 = arith.constant 0.000000e+00 : f32
      %21 = vector.broadcast %cst_13 : f32 to vector<8x128xf32>
      %c0_14 = arith.constant 0 : index
      %c0_15 = arith.constant 0 : index
      %22 = vector.load %arg11[%c0_14, %c0_15] : memref<8x128xf32, #tpu.memory_space<vmem>>, vector<8x128xf32>
      tpu.vector_store %arg11[%c0_14, %c0_15], %21 {strides = array<i32>} : memref<8x128xf32, #tpu.memory_space<vmem>>, vector<8x128xf32>,
    } else {
    }
    %c1_i32_1 = arith.constant 1 : i32
    %5 = arith.cmpi slt, %1, %c1_i32_1 : i32
    %6 = arith.extui %5 : i1 to i32
    %c0_i32_2 = arith.constant 0 : i32
    %7 = arith.cmpi ne, %6, %c0_i32_2 : i32
    scf.if %7 {
      %c0 = arith.constant 0 : index
      %c0_9 = arith.constant 0 : index
      %17 = vector.load %arg2[%c0, %c0_9] : memref<8x128xf32, #tpu.memory_space<vmem>>, vector<8x128xf32>
      %c0_10 = arith.constant 0 : index
      %c0_11 = arith.constant 0 : index
      %18 = vector.load %arg3[%c0_10, %c0_11] : memref<8x128xf32, #tpu.memory_space<vmem>>, vector<8x128xf32>
      %c0_12 = arith.constant 0 : index
      %c0_13 = arith.constant 0 : index
      %19 = vector.load %arg4[%c0_12, %c0_13] : memref<8x128xf32, #tpu.memory_space<vmem>>, vector<8x128xf32>
      %c0_14 = arith.constant 0 : index
      %c0_15 = arith.constant 0 : index
      %20 = vector.load %arg5[%c0_14, %c0_15] : memref<8x128xf32, #tpu.memory_space<vmem>>, vector<8x128xf32>
      %21 = arith.mulf %17, %17 : vector<8x128xf32>
      %22 = arith.mulf %18, %18 : vector<8x128xf32>
      %23 = arith.addf %21, %22 : vector<8x128xf32>
      %cst = arith.constant 1.000000e+00 : f32
      %24 = vector.broadcast %cst : f32 to vector<8x128xf32>
      %25 = arith.subf %24, %23 : vector<8x128xf32>
      %26 = arith.mulf %19, %19 : vector<8x128xf32>
      %27 = arith.mulf %20, %20 : vector<8x128xf32>
      %28 = arith.addf %26, %27 : vector<8x128xf32>
      %cst_16 = arith.constant 1.000000e+00 : f32
      %29 = vector.broadcast %cst_16 : f32 to vector<8x128xf32>
      %30 = arith.subf %29, %28 : vector<8x128xf32>
      %31 = arith.mulf %17, %19 : vector<8x128xf32>
      %32 = arith.mulf %18, %20 : vector<8x128xf32>
      %33 = arith.addf %31, %32 : vector<8x128xf32>
      %cst_17 = arith.constant 1.000000e+00 : f32
      %34 = vector.broadcast %cst_17 : f32 to vector<8x128xf32>
      %35 = arith.subf %34, %33 : vector<8x128xf32>
      %c0_18 = arith.constant 0 : index
      %c0_19 = arith.constant 0 : index
      %36 = vector.load %arg9[%c0_18, %c0_19] : memref<8x128xf32, #tpu.memory_space<vmem>>, vector<8x128xf32>
      %37 = arith.mulf %35, %35 : vector<8x128xf32>
      %38 = arith.mulf %25, %30 : vector<8x128xf32>
      %39 = arith.subf %37, %38 : vector<8x128xf32>
      %40 = arith.mulf %25, %30 : vector<8x128xf32>
      %41 = math.absf %40 : vector<8x128xf32>
      %cst_20 = arith.constant 9.99999971E-10 : f32
      %42 = vector.broadcast %cst_20 : f32 to vector<8x128xf32>
      %43 = arith.maximumf %41, %42 : vector<8x128xf32>
      %cst_21 = arith.constant 0.000000e+00 : f32
      %44 = vector.broadcast %cst_21 : f32 to vector<8x128xf32>
      %45 = arith.cmpf oge, %40, %44 : vector<8x128xf32>
      %cst_22 = arith.constant 0.000000e+00 : f32
      %46 = vector.broadcast %cst_22 : f32 to vector<8x128xf32>
      %47 = arith.subf %46, %43 : vector<8x128xf32>
      %48 = arith.select %45, %43, %47 : vector<8x128xi1>, vector<8x128xf32>
      %49 = tpu.reciprocal %48 {approx = true} : vector<8x128xf32> -> vector<8x128xf32>
      %50 = arith.mulf %48, %49 : vector<8x128xf32>
      %cst_23 = arith.constant 2.000000e+00 : f32
      %51 = vector.broadcast %cst_23 : f32 to vector<8x128xf32>
      %52 = arith.subf %51, %50 : vector<8x128xf32>
      %53 = arith.mulf %49, %52 : vector<8x128xf32>
      %54 = arith.mulf %39, %53 : vector<8x128xf32>
      %55 = vector.shape_cast %54 : vector<8x128xf32> to vector<1x8x128xf32>
      %cst_24 = arith.constant dense<0.000000e+00> : vector<8x128xf32>
      %56 = vector.multi_reduction <add>, %55, %cst_24 [0] : vector<1x8x128xf32> to vector<8x128xf32>
      %57 = arith.addf %36, %56 : vector<8x128xf32>
      %c0_25 = arith.constant 0 : index
      %c0_26 = arith.constant 0 : index
      %58 = vector.load %arg9[%c0_25, %c0_26] : memref<8x128xf32, #tpu.memory_space<vmem>>, vector<8x128xf32>
      tpu.vector_store %arg9[%c0_25, %c0_26], %57 {strides = array<i32>} : memref<8x128xf32, #tpu.memory_space<vmem>>, vector<8x128xf32>,
    } else {
    }
    %c1_i32_3 = arith.constant 1 : i32
    %8 = arith.cmpi slt, %1, %c1_i32_3 : i32
    %9 = arith.extui %8 : i1 to i32
    %c0_i32_4 = arith.constant 0 : i32
    %10 = arith.cmpi ne, %9, %c0_i32_4 : i32
    scf.if %10 {
      %c0 = arith.constant 0 : index
      %c0_9 = arith.constant 0 : index
      %17 = vector.load %arg6[%c0, %c0_9] : memref<8x128xf32, #tpu.memory_space<vmem>>, vector<8x128xf32>
      %c0_10 = arith.constant 0 : index
      %c0_11 = arith.constant 0 : index
      %18 = vector.load %arg7[%c0_10, %c0_11] : memref<8x128xf32, #tpu.memory_space<vmem>>, vector<8x128xf32>
      %19 = arith.mulf %17, %17 : vector<8x128xf32>
      %20 = arith.mulf %18, %18 : vector<8x128xf32>
      %21 = arith.addf %19, %20 : vector<8x128xf32>
      %cst = arith.constant 1.000000e+00 : f32
      %22 = vector.broadcast %cst : f32 to vector<8x128xf32>
      %23 = arith.subf %22, %21 : vector<8x128xf32>
      %c0_12 = arith.constant 0 : index
      %c0_13 = arith.constant 0 : index
      %24 = vector.load %arg10[%c0_12, %c0_13] : memref<8x128xf32, #tpu.memory_space<vmem>>, vector<8x128xf32>
      %cst_14 = arith.constant 1.000000e+00 : f32
      %25 = vector.broadcast %cst_14 : f32 to vector<8x128xf32>
      %26 = arith.subf %25, %23 : vector<8x128xf32>
      %27 = math.absf %23 : vector<8x128xf32>
      %cst_15 = arith.constant 9.99999971E-10 : f32
      %28 = vector.broadcast %cst_15 : f32 to vector<8x128xf32>
      %29 = arith.maximumf %27, %28 : vector<8x128xf32>
      %cst_16 = arith.constant 0.000000e+00 : f32
      %30 = vector.broadcast %cst_16 : f32 to vector<8x128xf32>
      %31 = arith.cmpf oge, %23, %30 : vector<8x128xf32>
      %cst_17 = arith.constant 0.000000e+00 : f32
      %32 = vector.broadcast %cst_17 : f32 to vector<8x128xf32>
      %33 = arith.subf %32, %29 : vector<8x128xf32>
      %34 = arith.select %31, %29, %33 : vector<8x128xi1>, vector<8x128xf32>
      %35 = tpu.reciprocal %34 {approx = true} : vector<8x128xf32> -> vector<8x128xf32>
      %36 = arith.mulf %34, %35 : vector<8x128xf32>
      %cst_18 = arith.constant 2.000000e+00 : f32
      %37 = vector.broadcast %cst_18 : f32 to vector<8x128xf32>
      %38 = arith.subf %37, %36 : vector<8x128xf32>
      %39 = arith.mulf %35, %38 : vector<8x128xf32>
      %40 = arith.mulf %26, %39 : vector<8x128xf32>
      %41 = vector.shape_cast %40 : vector<8x128xf32> to vector<1x8x128xf32>
      %cst_19 = arith.constant dense<0.000000e+00> : vector<8x128xf32>
      %42 = vector.multi_reduction <add>, %41, %cst_19 [0] : vector<1x8x128xf32> to vector<8x128xf32>
      %43 = arith.addf %24, %42 : vector<8x128xf32>
      %c0_20 = arith.constant 0 : index
      %c0_21 = arith.constant 0 : index
      %44 = vector.load %arg10[%c0_20, %c0_21] : memref<8x128xf32, #tpu.memory_space<vmem>>, vector<8x128xf32>
      tpu.vector_store %arg10[%c0_20, %c0_21], %43 {strides = array<i32>} : memref<8x128xf32, #tpu.memory_space<vmem>>, vector<8x128xf32>,
    } else {
    }
    %c0_i32_5 = arith.constant 0 : i32
    %11 = arith.cmpi eq, %1, %c0_i32_5 : i32
    %12 = arith.extui %11 : i1 to i32
    %c0_i32_6 = arith.constant 0 : i32
    %13 = arith.cmpi ne, %12, %c0_i32_6 : i32
    scf.if %13 {
      %c0 = arith.constant 0 : index
      %c0_9 = arith.constant 0 : index
      %17 = vector.load %arg2[%c0, %c0_9] : memref<8x128xf32, #tpu.memory_space<vmem>>, vector<8x128xf32>
      %c0_10 = arith.constant 0 : index
      %c0_11 = arith.constant 0 : index
      %18 = vector.load %arg3[%c0_10, %c0_11] : memref<8x128xf32, #tpu.memory_space<vmem>>, vector<8x128xf32>
      %c0_12 = arith.constant 0 : index
      %c0_13 = arith.constant 0 : index
      %19 = vector.load %arg4[%c0_12, %c0_13] : memref<8x128xf32, #tpu.memory_space<vmem>>, vector<8x128xf32>
      %c0_14 = arith.constant 0 : index
      %c0_15 = arith.constant 0 : index
      %20 = vector.load %arg5[%c0_14, %c0_15] : memref<8x128xf32, #tpu.memory_space<vmem>>, vector<8x128xf32>
      %21 = arith.mulf %17, %17 : vector<8x128xf32>
      %22 = arith.mulf %18, %18 : vector<8x128xf32>
      %23 = arith.addf %21, %22 : vector<8x128xf32>
      %cst = arith.constant 0.000000e+00 : f32
      %24 = vector.broadcast %cst : f32 to vector<8x128xf32>
      %25 = arith.subf %24, %23 : vector<8x128xf32>
      %26 = arith.mulf %19, %19 : vector<8x128xf32>
      %27 = arith.mulf %20, %20 : vector<8x128xf32>
      %28 = arith.addf %26, %27 : vector<8x128xf32>
      %cst_16 = arith.constant 0.000000e+00 : f32
      %29 = vector.broadcast %cst_16 : f32 to vector<8x128xf32>
      %30 = arith.subf %29, %28 : vector<8x128xf32>
      %31 = arith.mulf %17, %19 : vector<8x128xf32>
      %32 = arith.mulf %18, %20 : vector<8x128xf32>
      %33 = arith.addf %31, %32 : vector<8x128xf32>
      %cst_17 = arith.constant 0.000000e+00 : f32
      %34 = vector.broadcast %cst_17 : f32 to vector<8x128xf32>
      %35 = arith.subf %34, %33 : vector<8x128xf32>
      %36 = arith.mulf %35, %35 : vector<8x128xf32>
      %37 = arith.mulf %25, %30 : vector<8x128xf32>
      %38 = arith.subf %36, %37 : vector<8x128xf32>
      %39 = arith.mulf %25, %30 : vector<8x128xf32>
      %40 = math.absf %39 : vector<8x128xf32>
      %cst_18 = arith.constant 9.99999971E-10 : f32
      %41 = vector.broadcast %cst_18 : f32 to vector<8x128xf32>
      %42 = arith.maximumf %40, %41 : vector<8x128xf32>
      %cst_19 = arith.constant 0.000000e+00 : f32
      %43 = vector.broadcast %cst_19 : f32 to vector<8x128xf32>
      %44 = arith.cmpf oge, %39, %43 : vector<8x128xf32>
      %cst_20 = arith.constant 0.000000e+00 : f32
      %45 = vector.broadcast %cst_20 : f32 to vector<8x128xf32>
      %46 = arith.subf %45, %42 : vector<8x128xf32>
      %47 = arith.select %44, %42, %46 : vector<8x128xi1>, vector<8x128xf32>
      %48 = tpu.reciprocal %47 {approx = true} : vector<8x128xf32> -> vector<8x128xf32>
      %49 = arith.mulf %47, %48 : vector<8x128xf32>
      %cst_21 = arith.constant 2.000000e+00 : f32
      %50 = vector.broadcast %cst_21 : f32 to vector<8x128xf32>
      %51 = arith.subf %50, %49 : vector<8x128xf32>
      %52 = arith.mulf %48, %51 : vector<8x128xf32>
      %53 = arith.mulf %38, %52 : vector<8x128xf32>
      %54 = tpu.iota {dimensions = array<i32: 0>} : vector<8x128xi32>
      %55 = tpu.iota {dimensions = array<i32: 1>} : vector<8x128xi32>
      %c128_i32 = arith.constant 128 : i32
      %56 = vector.broadcast %c128_i32 : i32 to vector<8x128xi32>
      %57 = arith.muli %54, %56 : vector<8x128xi32>
      %58 = arith.addi %57, %55 : vector<8x128xi32>
      %c10_i32 = arith.constant 10 : i32
      %59 = vector.broadcast %c10_i32 : i32 to vector<8x128xi32>
      %60 = arith.cmpi slt, %58, %59 : vector<8x128xi32>
      %cst_22 = arith.constant 0.000000e+00 : f32
      %61 = vector.broadcast %cst_22 : f32 to vector<8x128xf32>
      %62 = arith.select %60, %53, %61 : vector<8x128xi1>, vector<8x128xf32>
      %c0_23 = arith.constant 0 : index
      %c0_24 = arith.constant 0 : index
      %63 = vector.load %arg11[%c0_23, %c0_24] : memref<8x128xf32, #tpu.memory_space<vmem>>, vector<8x128xf32>
      tpu.vector_store %arg11[%c0_23, %c0_24], %62 {strides = array<i32>} : memref<8x128xf32, #tpu.memory_space<vmem>>, vector<8x128xf32>,
    } else {
    }
    %c0_i32_7 = arith.constant 0 : i32
    %14 = arith.cmpi eq, %arg1, %c0_i32_7 : i32
    %15 = arith.extui %14 : i1 to i32
    %c0_i32_8 = arith.constant 0 : i32
    %16 = arith.cmpi ne, %15, %c0_i32_8 : i32
    scf.if %16 {
      %c0 = arith.constant 0 : index
      %c0_9 = arith.constant 0 : index
      %17 = vector.load %arg9[%c0, %c0_9] : memref<8x128xf32, #tpu.memory_space<vmem>>, vector<8x128xf32>
      %18 = vector.shape_cast %17 : vector<8x128xf32> to vector<1x8x128xf32>
      %cst = arith.constant dense<0.000000e+00> : vector<1xf32>
      %19 = vector.multi_reduction <add>, %18, %cst [1, 2] : vector<1x8x128xf32> to vector<1xf32>
      %20 = vector.shape_cast %19 : vector<1xf32> to vector<1x1x1xf32>
      %21 = vector.extract %20[0, 0, 0] : f32 from vector<1x1x1xf32>
      %cst_10 = arith.constant 2.400000e+01 : f32
      %22 = arith.divf %21, %cst_10 : f32
      %c0_11 = arith.constant 0 : index
      %c0_12 = arith.constant 0 : index
      %23 = vector.load %arg10[%c0_11, %c0_12] : memref<8x128xf32, #tpu.memory_space<vmem>>, vector<8x128xf32>
      %24 = vector.shape_cast %23 : vector<8x128xf32> to vector<1x8x128xf32>
      %cst_13 = arith.constant dense<0.000000e+00> : vector<1xf32>
      %25 = vector.multi_reduction <add>, %24, %cst_13 [1, 2] : vector<1x8x128xf32> to vector<1xf32>
      %26 = vector.shape_cast %25 : vector<1xf32> to vector<1x1x1xf32>
      %27 = vector.extract %26[0, 0, 0] : f32 from vector<1x1x1xf32>
      %cst_14 = arith.constant 1.600000e+01 : f32
      %28 = arith.divf %27, %cst_14 : f32
      %c0_15 = arith.constant 0 : index
      %c0_16 = arith.constant 0 : index
      %29 = vector.load %arg11[%c0_15, %c0_16] : memref<8x128xf32, #tpu.memory_space<vmem>>, vector<8x128xf32>
      %30 = vector.shape_cast %29 : vector<8x128xf32> to vector<1x8x128xf32>
      %cst_17 = arith.constant dense<0.000000e+00> : vector<1xf32>
      %31 = vector.multi_reduction <add>, %30, %cst_17 [1, 2] : vector<1x8x128xf32> to vector<1xf32>
      %32 = vector.shape_cast %31 : vector<1xf32> to vector<1x1x1xf32>
      %33 = vector.extract %32[0, 0, 0] : f32 from vector<1x1x1xf32>
      %cst_18 = arith.constant 1.000000e+01 : f32
      %34 = arith.divf %33, %cst_18 : f32
      %35 = arith.addf %22, %28 : f32
      %cst_19 = arith.constant 1.000000e+00 : f32
      %36 = arith.mulf %cst_19, %35 : f32
      %cst_20 = arith.constant 1.000000e-01 : f32
      %37 = arith.mulf %cst_20, %34 : f32
      %38 = arith.addf %36, %37 : f32
      %39 = vector.broadcast %38 : f32 to vector<8x128xf32>
      %c0_21 = arith.constant 0 : index
      %c0_22 = arith.constant 0 : index
      %40 = vector.load %arg8[%c0_21, %c0_22] : memref<8x128xf32, #tpu.memory_space<vmem>>, vector<8x128xf32>
      tpu.vector_store %arg8[%c0_21, %c0_22], %39 {strides = array<i32>} : memref<8x128xf32, #tpu.memory_space<vmem>>, vector<8x128xf32>,
    } else {
    }
    return
  }
  func.func @transform_0(%arg0: i32, %arg1: i32) -> (i32, i32) {
    %c1_i32 = arith.constant 1 : i32
    %0 = arith.muli %arg0, %c1_i32 : i32
    %1 = arith.addi %0, %arg1 : i32
    %c0_i32 = arith.constant 0 : i32
    %2 = arith.minsi %1, %c0_i32 : i32
    %c0_i32_0 = arith.constant 0 : i32
    %c0_i32_1 = arith.constant 0 : i32
    return %2, %c0_i32_0 : i32, i32
  }
  func.func @transform_1(%arg0: i32, %arg1: i32) -> (i32, i32) {
    %c1_i32 = arith.constant 1 : i32
    %0 = arith.muli %arg0, %c1_i32 : i32
    %1 = arith.addi %0, %arg1 : i32
    %c0_i32 = arith.constant 0 : i32
    %2 = arith.minsi %1, %c0_i32 : i32
    %c0_i32_0 = arith.constant 0 : i32
    %c0_i32_1 = arith.constant 0 : i32
    return %2, %c0_i32_0 : i32, i32
  }
  func.func @transform_2(%arg0: i32, %arg1: i32) -> (i32, i32) {
    %c1_i32 = arith.constant 1 : i32
    %0 = arith.muli %arg0, %c1_i32 : i32
    %1 = arith.addi %0, %arg1 : i32
    %c0_i32 = arith.constant 0 : i32
    %2 = arith.minsi %1, %c0_i32 : i32
    %c0_i32_0 = arith.constant 0 : i32
    %c0_i32_1 = arith.constant 0 : i32
    return %2, %c0_i32_0 : i32, i32
  }
  func.func @transform_3(%arg0: i32, %arg1: i32) -> (i32, i32) {
    %c1_i32 = arith.constant 1 : i32
    %0 = arith.muli %arg0, %c1_i32 : i32
    %1 = arith.addi %0, %arg1 : i32
    %c0_i32 = arith.constant 0 : i32
    %2 = arith.minsi %1, %c0_i32 : i32
    %c0_i32_0 = arith.constant 0 : i32
    %c0_i32_1 = arith.constant 0 : i32
    return %2, %c0_i32_0 : i32, i32
  }
  func.func @transform_4(%arg0: i32, %arg1: i32) -> (i32, i32) {
    %c1_i32 = arith.constant 1 : i32
    %0 = arith.muli %arg0, %c1_i32 : i32
    %1 = arith.addi %0, %arg1 : i32
    %c0_i32 = arith.constant 0 : i32
    %2 = arith.minsi %1, %c0_i32 : i32
    %c0_i32_0 = arith.constant 0 : i32
    %c0_i32_1 = arith.constant 0 : i32
    return %2, %c0_i32_0 : i32, i32
  }
  func.func @transform_5(%arg0: i32, %arg1: i32) -> (i32, i32) {
    %c1_i32 = arith.constant 1 : i32
    %0 = arith.muli %arg0, %c1_i32 : i32
    %1 = arith.addi %0, %arg1 : i32
    %c0_i32 = arith.constant 0 : i32
    %2 = arith.minsi %1, %c0_i32 : i32
    %c0_i32_0 = arith.constant 0 : i32
    %c0_i32_1 = arith.constant 0 : i32
    return %2, %c0_i32_0 : i32, i32
  }
  func.func @transform_6(%arg0: i32, %arg1: i32) -> (i32, i32) {
    %c0_i32 = arith.constant 0 : i32
    %c0_i32_0 = arith.constant 0 : i32
    return %arg0, %c0_i32 : i32, i32
  }
}

</mosaic_0001>

<llo_original>
// kernel: tpu_custom_call.1
$region0: #{tpu_custom_call.1}
  #allocation0 [shape = 'u32[]', space=smem, size = 0x4, offset = 0x4, fixed_abs, tag = 'smem constant byte address 0x4 - core index']
  #allocation1 [shape = 'u32[144,128]{1,0:T(1,128)}', space=vmem, size = 0x12000, scoped, tag = 'internal scratch']
  #allocation2 [shape = 'f32[8,128]{1,0:T(8,128)}', space=vmem, size = 0x1000, scoped, tag = 'scratch operand']
  #allocation3 [shape = 'f32[8,128]{1,0:T(8,128)}', space=vmem, size = 0x1000, scoped, tag = 'scratch operand']
  #allocation4 [shape = 'f32[8,128]{1,0:T(8,128)}', space=vmem, size = 0x1000, scoped, tag = 'scratch operand']
  %s0 = inlined_call_operand.hbm [shape: f32[8,128], index: 0, kind: input, shape index: {}]
  %s1 = inlined_call_operand.hbm [shape: f32[8,128], index: 1, kind: input, shape index: {}]
  %s2 = inlined_call_operand.hbm [shape: f32[8,128], index: 2, kind: input, shape index: {}]
  %s3 = inlined_call_operand.vmem [shape: f32[8,128], index: 3, kind: input, shape index: {}]
  %s4 = inlined_call_operand.hbm [shape: f32[8,128], index: 4, kind: input, shape index: {}]
  %s5 = inlined_call_operand.vmem [shape: f32[8,128], index: 5, kind: input, shape index: {}]
  %s6 = inlined_call_operand.hbm [shape: f32[8,128], index: 6, kind: output, shape index: {}]
  %s7 = sld [smem:[#allocation0]]
  $region66: #{tpu_custom_call.1} parent=0
    _
  %s9 = ssub.s32 1, %s7
  %s10 = scalar_select 0, %s9, %s7
  $region1: #{tpu_custom_call.1} parent=0
    #allocation5 [shape = 'u8[4096]{0}', space=vmem, size = 0x1000, scoped, tag = 'input window, operand 0, single buffered']
    #allocation6 [shape = 's32[1]{0}', space=sflag, size = 0x4, scoped, tag = 'scoped memory for tpu_custom_call.1']
    #allocation7 [shape = 's32[1]{0}', space=sflag, size = 0x4, scoped, tag = 'scoped memory for tpu_custom_call.1']
    #allocation8 [shape = 'u8[4096]{0}', space=vmem, size = 0x1000, scoped, tag = 'input window, operand 1, single buffered']
    #allocation9 [shape = 's32[1]{0}', space=sflag, size = 0x4, scoped, tag = 'scoped memory for tpu_custom_call.1']
    #allocation10 [shape = 'u8[4096]{0}', space=vmem, size = 0x1000, scoped, tag = 'input window, operand 2, single buffered']
    #allocation11 [shape = 'u8[4096]{0}', space=vmem, size = 0x1000, scoped, tag = 'input window, operand 4, single buffered']
    #allocation12 [shape = 's32[1]{0}', space=sflag, size = 0x4, scoped, tag = 'scoped memory for tpu_custom_call.1']
    #allocation13 [shape = 'u8[4096]{0}', space=vmem, size = 0x1000, scoped, tag = 'output window, operand 0, single buffered']
    %11 = vsyncpa [#allocation6], 0
    %12 = vsyncpa [#allocation9], 0
    %13 = vsyncpa [#allocation12], 0
    %14 = vsyncpa [#allocation7], 0
    // Predicated region
    $region2: #{tpu_custom_call.1} parent=1 // pred_check
      _
    $region3: #{tpu_custom_call.1} parent=1 // pred_check_branch
      %16 = sbr.rel (0) target = $region5
    $region4: #{tpu_custom_call.1} parent=1 // pred_region
      %s17 = sadd.s32 0, 0
      %p18 = scmp.lt.s32.totalorder %s17, 0
      %s19 = scalar_select %p18, %s17, 0
      %s21 = ssub.s32 128, 128
      %22 = vsyncadd [#allocation6], %s21
      %s23 = smul.addr %s19, 128
      %s24 = scalar_lea.hbm %s0, %s23
      %s26 = sshll.u32 [#allocation5], 4
      %s27 = int_to_ptr.vmem [resolvable:$true] %s26
      %29 = dma.hbm_to_vmem [thread:$0]  %s24, 128, %s27, [#allocation6]
    $region5: #{tpu_custom_call.1} parent=1 // pred_fallthru
      _
    // Predicated region
    $region6: #{tpu_custom_call.1} parent=1 // pred_check
      _
    $region7: #{tpu_custom_call.1} parent=1 // pred_check_branch
      %31 = sbr.rel (0) target = $region9
    $region8: #{tpu_custom_call.1} parent=1 // pred_region
      %s32 = sadd.s32 0, 0
      %p33 = scmp.lt.s32.totalorder %s32, 0
      %s34 = scalar_select %p33, %s32, 0
      %s36 = ssub.s32 128, 128
      %37 = vsyncadd [#allocation9], %s36
      %s38 = smul.addr %s34, 128
      %s39 = scalar_lea.hbm %s1, %s38
      %s41 = sshll.u32 [#allocation8], 4
      %s42 = int_to_ptr.vmem [resolvable:$true] %s41
      %44 = dma.hbm_to_vmem [thread:$0]  %s39, 128, %s42, [#allocation9]
    $region9: #{tpu_custom_call.1} parent=1 // pred_fallthru
      _
    // Predicated region
    $region10: #{tpu_custom_call.1} parent=1 // pred_check
      _
    $region11: #{tpu_custom_call.1} parent=1 // pred_check_branch
      %46 = sbr.rel (0) target = $region13
    $region12: #{tpu_custom_call.1} parent=1 // pred_region
      %s47 = sadd.s32 0, 0
      %p48 = scmp.lt.s32.totalorder %s47, 0
      %s49 = scalar_select %p48, %s47, 0
      %s51 = ssub.s32 128, 128
      %52 = vsyncadd [#allocation9], %s51
      %s53 = smul.addr %s49, 128
      %s54 = scalar_lea.hbm %s2, %s53
      %s56 = sshll.u32 [#allocation10], 4
      %s57 = int_to_ptr.vmem [resolvable:$true] %s56
      %59 = dma.hbm_to_vmem [thread:$0]  %s54, 128, %s57, [#allocation9]
    $region13: #{tpu_custom_call.1} parent=1 // pred_fallthru
      _
    // Predicated region
    $region14: #{tpu_custom_call.1} parent=1 // pred_check
      _
    $region15: #{tpu_custom_call.1} parent=1 // pred_check_branch
      %61 = sbr.rel (0) target = $region17
    $region16: #{tpu_custom_call.1} parent=1 // pred_region
      %s62 = sadd.s32 0, 0
      %p63 = scmp.lt.s32.totalorder %s62, 0
      %s64 = scalar_select %p63, %s62, 0
      %p65 = scmp.lt.s32.totalorder %s64, 0
      %s66 = scalar_select %p65, %s64, 0
      %s67 = smul.addr %s66, 8
      %s68 = scalar_lea.vmem %s3, %s67
      %s69 = sadd.s32 0, 0
      %p70 = scmp.lt.s32.totalorder %s69, 0
      %s71 = scalar_select %p70, %s69, 0
    $region17: #{tpu_custom_call.1} parent=1 // pred_fallthru
      _
    // Predicated region
    $region18: #{tpu_custom_call.1} parent=1 // pred_check
      _
    $region19: #{tpu_custom_call.1} parent=1 // pred_check_branch
      %73 = sbr.rel (0) target = $region21
    $region20: #{tpu_custom_call.1} parent=1 // pred_region
      %s74 = sadd.s32 0, 0
      %p75 = scmp.lt.s32.totalorder %s74, 0
      %s76 = scalar_select %p75, %s74, 0
      %s78 = ssub.s32 128, 128
      %79 = vsyncadd [#allocation12], %s78
      %s80 = smul.addr %s76, 128
      %s81 = scalar_lea.hbm %s4, %s80
      %s83 = sshll.u32 [#allocation11], 4
      %s84 = int_to_ptr.vmem [resolvable:$true] %s83
      %86 = dma.hbm_to_vmem [thread:$0]  %s81, 128, %s84, [#allocation12]
    $region21: #{tpu_custom_call.1} parent=1 // pred_fallthru
      _
    // Predicated region
    $region22: #{tpu_custom_call.1} parent=1 // pred_check
      _
    $region23: #{tpu_custom_call.1} parent=1 // pred_check_branch
      %88 = sbr.rel (0) target = $region25
    $region24: #{tpu_custom_call.1} parent=1 // pred_region
      %s89 = sadd.s32 0, 0
      %p90 = scmp.lt.s32.totalorder %s89, 0
      %s91 = scalar_select %p90, %s89, 0
      %p92 = scmp.lt.s32.totalorder %s91, 0
      %s93 = scalar_select %p92, %s91, 0
      %s94 = smul.addr %s93, 8
      %s95 = scalar_lea.vmem %s5, %s94
      %s96 = sadd.s32 0, 0
      %p97 = scmp.lt.s32.totalorder %s96, 0
      %s98 = scalar_select %p97, %s96, 0
    $region25: #{tpu_custom_call.1} parent=1 // pred_fallthru
      _
    // Predicated region
    $region26: #{tpu_custom_call.1} parent=1 // pred_check
      _
    $region27: #{tpu_custom_call.1} parent=1 // pred_check_branch
      %100 = sbr.rel (0) target = $region29
    $region28: #{tpu_custom_call.1} parent=1 // pred_region
      %101 = dma.done [#allocation6], 128
    $region29: #{tpu_custom_call.1} parent=1 // pred_fallthru
      _
    // Predicated region
    $region30: #{tpu_custom_call.1} parent=1 // pred_check
      _
    $region31: #{tpu_custom_call.1} parent=1 // pred_check_branch
      %103 = sbr.rel (0) target = $region33
    $region32: #{tpu_custom_call.1} parent=1 // pred_region
      %104 = dma.done [#allocation9], 128
    $region33: #{tpu_custom_call.1} parent=1 // pred_fallthru
      _
    // Predicated region
    $region34: #{tpu_custom_call.1} parent=1 // pred_check
      _
    $region35: #{tpu_custom_call.1} parent=1 // pred_check_branch
      %106 = sbr.rel (0) target = $region37
    $region36: #{tpu_custom_call.1} parent=1 // pred_region
      %107 = dma.done [#allocation9], 128
    $region37: #{tpu_custom_call.1} parent=1 // pred_fallthru
      _
    // Predicated region
    $region38: #{tpu_custom_call.1} parent=1 // pred_check
      _
    $region39: #{tpu_custom_call.1} parent=1 // pred_check_branch
      %109 = sbr.rel (0) target = $region41
    $region40: #{tpu_custom_call.1} parent=1 // pred_region
      %110 = dma.done [#allocation12], 128
    $region41: #{tpu_custom_call.1} parent=1 // pred_fallthru
      _
    %s111 = sadd.s32 0, 0
    %p112 = scmp.lt.s32.totalorder %s111, 0
    %s113 = scalar_select %p112, %s111, 0
    %p114 = scmp.lt.s32.totalorder %s113, 0
    %s115 = scalar_select %p114, %s113, 0
    %s116 = smul.addr %s115, 8
    %s117 = scalar_lea.vmem %s3, %s116
    %s118 = sadd.s32 0, 0
    %p119 = scmp.lt.s32.totalorder %s118, 0
    %s120 = scalar_select %p119, %s118, 0
    %p121 = scmp.lt.s32.totalorder %s120, 0
    %s122 = scalar_select %p121, %s120, 0
    %s123 = smul.addr %s122, 8
    %s124 = scalar_lea.vmem %s5, %s123
    %s125 = sadd.s32 0, 0
    %p126 = scmp.lt.s32.totalorder %s125, 0
    %s127 = scalar_select %p126, %s125, 0
    %s128 = sadd.s32 0, 0
    %p129 = scmp.lt.s32.totalorder %s128, 0
    %s130 = scalar_select %p129, %s128, 0
    %s131 = sadd.s32 0, 0
    %p132 = scmp.lt.s32.totalorder %s131, 0
    %s133 = scalar_select %p132, %s131, 0
    %s134 = sadd.s32 0, 0
    %p135 = scmp.lt.s32.totalorder %s134, 0
    %s136 = scalar_select %p135, %s134, 0
    %p137 = scmp.lt.s32.totalorder %s136, 0
    %s138 = scalar_select %p137, %s136, 0
    %s139 = smul.addr %s138, 8
    %s140 = scalar_lea.vmem %s3, %s139
    %s141 = sadd.s32 0, 0
    %p142 = scmp.lt.s32.totalorder %s141, 0
    %s143 = scalar_select %p142, %s141, 0
    %s144 = sadd.s32 0, 0
    %p145 = scmp.lt.s32.totalorder %s144, 0
    %s146 = scalar_select %p145, %s144, 0
    %s147 = sadd.s32 0, 0
    %p148 = scmp.lt.s32.totalorder %s147, 0
    %s149 = scalar_select %p148, %s147, 0
    %p150 = scmp.lt.s32.totalorder %s149, 0
    %s151 = scalar_select %p150, %s149, 0
    %s152 = smul.addr %s151, 8
    %s153 = scalar_lea.vmem %s5, %s152
    %s154 = sadd.s32 0, 0
    %p155 = scmp.lt.s32.totalorder %s154, 0
    %s156 = scalar_select %p155, %s154, 0
    %s157 = sadd.s32 0, 0
    %p158 = scmp.eq.s32.totalorder 0, 0
    // Predicated region
    $region42: #{tpu_custom_call.1} parent=1 // pred_check
      %p159 = pneg %p158
    $region43: #{tpu_custom_call.1} parent=1 // pred_check_branch
      %161 = sbr.rel (%p159) target = $region45
    $region44: #{tpu_custom_call.1} parent=1 // pred_region
      %162 = vst [vmem:[#allocation2] sm:$0xff] 0.0
      %163 = vst [vmem:[#allocation3] sm:$0xff] 0.0
      %164 = vst [vmem:[#allocation4] sm:$0xff] 0.0
    $region45: #{tpu_custom_call.1} parent=1 // pred_fallthru
      _
    %p165 = scmp.lt.s32.totalorder %s157, 1
    // Predicated region
    $region46: #{tpu_custom_call.1} parent=1 // pred_check
      %p166 = pneg %p165
    $region47: #{tpu_custom_call.1} parent=1 // pred_check_branch
      %168 = sbr.rel (%p166) target = $region49
    $region48: #{tpu_custom_call.1} parent=1 // pred_region
      %v169 = vld [vmem:[#allocation5] sm:$0xff]
      %v170 = vld [vmem:[#allocation8] sm:$0xff]
      %v171 = vld [vmem:[#allocation10] sm:$0xff]
      %v172 = vld [vmem:[%s140] sm:$0xff]
      %v173 = vmul.f32 %v169, %v169
      %v174 = vmul.f32 %v170, %v170
      %v175 = vadd.f32 %v173, %v174
      %v176 = vsub.f32 1.0, %v175
      %v177 = vmul.f32 %v171, %v171
      %v178 = vmul.f32 %v172, %v172
      %v179 = vadd.f32 %v177, %v178
      %v180 = vsub.f32 1.0, %v179
      %v181 = vmul.f32 %v169, %v171
      %v182 = vmul.f32 %v170, %v172
      %v183 = vadd.f32 %v181, %v182
      %v184 = vsub.f32 1.0, %v183
      %v185 = vld [vmem:[#allocation2] sm:$0xff]
      %v186 = vmul.f32 %v184, %v184
      %v187 = vmul.f32 %v176, %v180
      %v188 = vsub.f32 %v186, %v187
      %v189 = vand.u32 2147483647, %v187
      %v190 = vmax.f32 %v189, 1e-09
      %vm191 = vcmp.ge.f32.partialorder %v187, 0.0
      %v192 = vsub.f32 0.0, %v190
      %v193 = vsel %vm191, %v190, %v192
      %v194 = vrcp.pop %v193
      %v195 = vmul.f32 %v193, %v194
      %v196 = vsub.f32 2.0, %v195
      %v197 = vmul.f32 %v194, %v196
      %v198 = vmul.f32 %v188, %v197
      %v199 = vadd.f32 %v198, 0.0
      %v200 = vadd.f32 %v185, %v199
      %201 = vst [vmem:[#allocation2] sm:$0xff] %v200
      %v202 = vld [vmem:[#allocation11] sm:$0xff]
      %v203 = vld [vmem:[%s153] sm:$0xff]
      %v204 = vmul.f32 %v202, %v202
      %v205 = vmul.f32 %v203, %v203
      %v206 = vadd.f32 %v204, %v205
      %v207 = vsub.f32 1.0, %v206
      %v208 = vld [vmem:[#allocation3] sm:$0xff]
      %v209 = vsub.f32 1.0, %v207
      %v210 = vand.u32 2147483647, %v207
      %v211 = vmax.f32 %v210, 1e-09
      %vm212 = vcmp.ge.f32.partialorder %v207, 0.0
      %v213 = vsub.f32 0.0, %v211
      %v214 = vsel %vm212, %v211, %v213
      %v215 = vrcp.pop %v214
      %v216 = vmul.f32 %v214, %v215
      %v217 = vsub.f32 2.0, %v216
      %v218 = vmul.f32 %v215, %v217
      %v219 = vmul.f32 %v209, %v218
      %v220 = vadd.f32 %v219, 0.0
      %v221 = vadd.f32 %v208, %v220
      %222 = vst [vmem:[#allocation3] sm:$0xff] %v221
    $region49: #{tpu_custom_call.1} parent=1 // pred_fallthru
      _
    %p223 = scmp.eq.s32.totalorder %s157, 0
    // Predicated region
    $region50: #{tpu_custom_call.1} parent=1 // pred_check
      %p224 = pneg %p223
    $region51: #{tpu_custom_call.1} parent=1 // pred_check_branch
      %226 = sbr.rel (%p224) target = $region53
    $region52: #{tpu_custom_call.1} parent=1 // pred_region
      %v227 = vld [vmem:[#allocation5] sm:$0xff]
      %v228 = vld [vmem:[#allocation8] sm:$0xff]
      %v229 = vld [vmem:[#allocation10] sm:$0xff]
      %v230 = vld [vmem:[%s140] sm:$0xff]
      %v231 = vmul.f32 %v227, %v227
      %v232 = vmul.f32 %v228, %v228
      %v233 = vadd.f32 %v231, %v232
      %v234 = vsub.f32 0.0, %v233
      %v235 = vmul.f32 %v229, %v229
      %v236 = vmul.f32 %v230, %v230
      %v237 = vadd.f32 %v235, %v236
      %v238 = vsub.f32 0.0, %v237
      %v239 = vmul.f32 %v227, %v229
      %v240 = vmul.f32 %v228, %v230
      %v241 = vadd.f32 %v239, %v240
      %v242 = vsub.f32 0.0, %v241
      %v243 = vmul.f32 %v242, %v242
      %v244 = vmul.f32 %v234, %v238
      %v245 = vsub.f32 %v243, %v244
      %v246 = vand.u32 2147483647, %v244
      %v247 = vmax.f32 %v246, 1e-09
      %vm248 = vcmp.ge.f32.partialorder %v244, 0.0
      %v249 = vsub.f32 0.0, %v247
      %v250 = vsel %vm248, %v247, %v249
      %v251 = vrcp.pop %v250
      %v252 = vmul.f32 %v250, %v251
      %v253 = vsub.f32 2.0, %v252
      %v254 = vmul.f32 %v251, %v253
      %v255 = vmul.f32 %v245, %v254
      %v256 = vlaneseq
      %v257 = vshrl.u32 %v256, 7
      %v258 = vlaneseq
      %v259 = vand.u32 %v258, 127
      %v260 = vmul.u32 %v257, 128
      %v261 = vadd.s32 %v260, %v259
      %vm262 = vcmp.lt.s32.totalorder %v261, 10
      %v263 = vsel %vm262, %v255, 0.0
      %264 = vst [vmem:[#allocation4] sm:$0xff] %v263
    $region53: #{tpu_custom_call.1} parent=1 // pred_fallthru
      _
    // Predicated region
    $region54: #{tpu_custom_call.1} parent=1 // pred_check
      %p265 = pneg %p158
    $region55: #{tpu_custom_call.1} parent=1 // pred_check_branch
      %267 = sbr.rel (%p265) target = $region57
    $region56: #{tpu_custom_call.1} parent=1 // pred_region
      %v268 = vld [vmem:[#allocation2] sm:$0xff]
      %269 = vadd.xlane.f32.xlu0 %v268
      %v270 = vpop.xlane.xlu0 %269
      %v271 = vrot.slane %v270, 4
      %v272 = vadd.f32 %v270, %v271
      %v273 = vrot.slane %v272, 2
      %v274 = vadd.f32 %v272, %v273
      %v275 = vrot.slane %v274, 1
      %v276 = vadd.f32 %v274, %v275
      %s277 = vtos %v276
      %v278 = vrcp.pop 24.0
      %s279 = vtos %v278
      %s280 = smul.f32 %s277, %s279
      %v281 = vld [vmem:[#allocation3] sm:$0xff]
      %282 = vadd.xlane.f32.xlu0 %v281
      %v283 = vpop.xlane.xlu0 %282
      %v284 = vrot.slane %v283, 4
      %v285 = vadd.f32 %v283, %v284
      %v286 = vrot.slane %v285, 2
      %v287 = vadd.f32 %v285, %v286
      %v288 = vrot.slane %v287, 1
      %v289 = vadd.f32 %v287, %v288
      %s290 = vtos %v289
      %v291 = vrcp.pop 16.0
      %s292 = vtos %v291
      %s293 = smul.f32 %s290, %s292
      %v294 = vld [vmem:[#allocation4] sm:$0xff]
      %295 = vadd.xlane.f32.xlu0 %v294
      %v296 = vpop.xlane.xlu0 %295
      %v297 = vrot.slane %v296, 4
      %v298 = vadd.f32 %v296, %v297
      %v299 = vrot.slane %v298, 2
      %v300 = vadd.f32 %v298, %v299
      %v301 = vrot.slane %v300, 1
      %v302 = vadd.f32 %v300, %v301
      %s303 = vtos %v302
      %v304 = vrcp.pop 10.0
      %s305 = vtos %v304
      %s306 = smul.f32 %s303, %s305
      %s307 = sadd.f32 %s280, %s293
      %s308 = smul.f32 %s306, 0.1
      %s309 = sadd.f32 %s307, %s308
      %v310 = vstv %s309
      %311 = vst [vmem:[#allocation13] sm:$0xff] %v310
    $region57: #{tpu_custom_call.1} parent=1 // pred_fallthru
      _
    // Predicated region
    $region58: #{tpu_custom_call.1} parent=1 // pred_check
      _
    $region59: #{tpu_custom_call.1} parent=1 // pred_check_branch
      %313 = sbr.rel (0) target = $region61
    $region60: #{tpu_custom_call.1} parent=1 // pred_region
      %s315 = ssub.s32 128, 128
      %316 = vsyncadd [#allocation7], %s315
      %s318 = sshll.u32 [#allocation13], 4
      %s319 = int_to_ptr.vmem [resolvable:$true] %s318
      %321 = dma.vmem_to_hbm [thread:$0]  %s319, 128, %s6, [#allocation7]
    $region61: #{tpu_custom_call.1} parent=1 // pred_fallthru
      _
    // Predicated region
    $region62: #{tpu_custom_call.1} parent=1 // pred_check
      _
    $region63: #{tpu_custom_call.1} parent=1 // pred_check_branch
      %323 = sbr.rel (0) target = $region65
    $region64: #{tpu_custom_call.1} parent=1 // pred_region
      %324 = dma.done [#allocation7], 128
    $region65: #{tpu_custom_call.1} parent=1 // pred_fallthru
      _
    %325 = vsyncpa [#allocation6], 1
    %326 = vsyncpa [#allocation9], 1
    %327 = vsyncpa [#allocation12], 1
    %328 = vsyncpa [#allocation7], 1

</llo_original>
